<compile_context>
chip_gen: v6e
topology: v6e:2x2x1
jax: 0.10.0
libtpu: 0.0.40
codegen_flags: <defaults>
</compile_context>

<pallas_src>
import functools

import numpy as np

import jax
import jax.numpy as jnp
from jax.experimental import pallas as pl
from jax.experimental.pallas import tpu as pltpu


def _round_up(x: int, m: int) -> int:
    return ((x + m - 1) // m) * m


def _cdiv(a: int, b: int) -> int:
    return (a + b - 1) // b


# ---------------------------------------------------------------------------
# Kernels
# ---------------------------------------------------------------------------
def _bmm_direct_kernel(x1_ref, x2_ref, o_ref):
    """Whole-K block per step: write the product directly (no accumulator)."""
    o_ref[...] = jnp.einsum(
        "bmk,bkn->bmn",
        x1_ref[...],
        x2_ref[...],
        preferred_element_type=jnp.float32,
    ).astype(o_ref.dtype)


def _bmm_acc_out_kernel(x1_ref, x2_ref, o_ref):
    """K-tiled matmul accumulating straight into the resident f32 output."""
    k = pl.program_id(3)
    part = jnp.einsum(
        "bmk,bkn->bmn",
        x1_ref[...],
        x2_ref[...],
        preferred_element_type=jnp.float32,
    )

    @pl.when(k == 0)
    def _():
        o_ref[...] = part          # assign, no zero-fill pass

    @pl.when(k > 0)
    def _():
        o_ref[...] += part


def _bmm_acc_scratch_kernel(x1_ref, x2_ref, o_ref, acc_ref):
    """K-tiled matmul with an f32 scratch accumulator (non-f32 outputs)."""
    k = pl.program_id(3)
    part = jnp.einsum(
        "bmk,bkn->bmn",
        x1_ref[...],
        x2_ref[...],
        preferred_element_type=jnp.float32,
    )

    @pl.when(k == 0)
    def _():
        acc_ref[...] = part

    @pl.when(k > 0)
    def _():
        acc_ref[...] += part

    @pl.when(k == pl.num_programs(3) - 1)
    def _():
        o_ref[...] = acc_ref[...].astype(o_ref.dtype)


# ---------------------------------------------------------------------------
# Hardware-aware helpers
# ---------------------------------------------------------------------------
def _device_kind() -> str:
    try:
        return jax.devices()[0].device_kind.lower()
    except Exception:
        return ""


def _vmem_capacity_bytes() -> int:
    try:
        return int(pltpu.get_tpu_info().vmem_capacity_bytes)
    except Exception:
        pass
    kind = _device_kind()
    if "v7" in kind:
        return 64 * 1024 * 1024
    if "v4" in kind or "v5" in kind or "v6" in kind:
        return 128 * 1024 * 1024
    return 64 * 1024 * 1024  # conservative default


def _default_tiles(kind: str, vmem_cap: int, itemsize: int):
    is_v5e = ("v5 lite" in kind) or ("v5e" in kind) or ("v5lite" in kind)
    is_v7 = ("v7" in kind) or (vmem_cap <= 64 * 1024 * 1024)
    if is_v5e:
        # 4x128x128 MXU, single vst slot: keep the f32 acc tile at 128x128.
        return 128, 128, 512
    if is_v7:
        # 64 MiB VMEM: small resident tiles, deeper K chunks (fewer acc
        # load/add/store round-trips through VMEM per output tile).
        return 256, 256, (1024 if itemsize <= 2 else 512)
    # v6e (128 MiB VMEM): bigger tiles cut HBM re-streaming of x1/x2.
    t = 512 if itemsize <= 2 else 256
    return t, t, 512


def _pick_batch_tile(B: int, per_b_bytes: int, budget_bytes: int,
                     other_parallel: int):
    """How many batch elements per grid step (and the batch padding needed)."""
    bt = max(1, min(B, budget_bytes // max(per_b_bytes, 1)))
    if other_parallel < 2 and B >= 2:
        # Keep >=2 "parallel" grid steps so both v7x TensorCores get work.
        bt = min(bt, max(1, B // 2))
    nb = _cdiv(B, bt)
    bt = _cdiv(B, nb)          # rebalance -> minimal batch padding
    return bt, nb, nb * bt - B


# ---------------------------------------------------------------------------
# Public wrapper (forward pass of QuantMatMul: out = bmm(x1, x2))
# ---------------------------------------------------------------------------
@functools.partial(
    jax.jit,
    static_argnames=("compute_dtype", "tm", "tn", "tk", "force_tiled"),
)
def quant_matmul(x1, x2, *, compute_dtype="auto", tm=None, tn=None, tk=None,
                 force_tiled=False):
    """Batched matmul (torch.bmm semantics) as a tiled Pallas TPU kernel."""
    B, M, K = x1.shape
    B2, K2, N = x2.shape
    assert B == B2 and K == K2, "shape mismatch for bmm"

    out_dtype = jnp.result_type(x1.dtype, x2.dtype)

    # ---- resolve MXU operand dtype -------------------------------------
    if compute_dtype == "auto":
        if jnp.issubdtype(out_dtype, jnp.floating) and np.dtype(out_dtype).itemsize >= 4:
            cdt = jnp.bfloat16          # bf16 MXU, f32 accumulation
        else:
            cdt = out_dtype
    elif compute_dtype is None:
        cdt = out_dtype
    else:
        cdt = np.dtype(compute_dtype)
    x1 = x1.astype(cdt)
    x2 = x2.astype(cdt)
    csize = np.dtype(cdt).itemsize
    osize = np.dtype(out_dtype).itemsize

    kind = _device_kind()
    vmem_cap = _vmem_capacity_bytes()
    operand_budget = vmem_cap // 3                       # ~42 MiB v5e/v6e, ~21 MiB v7x
    vmem_limit = min(int(vmem_cap * 0.75), 100 * 1024 * 1024)

    # ------------------------------------------------------------------
    # Small-matrix fast path: full-extent M/K/N blocks, no padding/slice.
    # ------------------------------------------------------------------
    per_b_small = 2 * (M * K + K * N) * csize + 2 * M * N * osize
    if (not force_tiled) and per_b_small <= operand_budget:
        bt, nb, pad_b = _pick_batch_tile(B, per_b_small, operand_budget, 1)
        if pad_b:
            x1 = jnp.pad(x1, ((0, pad_b), (0, 0), (0, 0)))
            x2 = jnp.pad(x2, ((0, pad_b), (0, 0), (0, 0)))
        Bp = B + pad_b

        flops = 2 * Bp * M * N * K
        bytes_accessed = (Bp * M * K + Bp * K * N) * csize + Bp * M * N * osize

        out = pl.pallas_call(
            _bmm_direct_kernel,
            out_shape=jax.ShapeDtypeStruct((Bp, M, N), out_dtype),
            grid_spec=pltpu.PrefetchScalarGridSpec(
                num_scalar_prefetch=0,
                grid=(nb,),
                in_specs=[
                    pl.BlockSpec((bt, M, K), lambda b: (b, 0, 0)),
                    pl.BlockSpec((bt, K, N), lambda b: (b, 0, 0)),
                ],
                out_specs=pl.BlockSpec((bt, M, N), lambda b: (b, 0, 0)),
            ),
            compiler_params=pltpu.CompilerParams(
                dimension_semantics=("parallel",),
                vmem_limit_bytes=vmem_limit,
            ),
            cost_estimate=pl.CostEstimate(
                flops=flops, transcendentals=0, bytes_accessed=bytes_accessed
            ),
        )(x1, x2)
        return out[:B] if pad_b else out

    # ------------------------------------------------------------------
    # Tiled path for large matrices.
    # ------------------------------------------------------------------
    tm0, tn0, tk0 = _default_tiles(kind, vmem_cap, csize)
    tm = tm0 if tm is None else tm
    tn = tn0 if tn is None else tn
    tk = tk0 if tk is None else tk

    # Packed sublane count: 8 for 32-bit, 16 for bf16, 32 for int8/fp8.
    sub = max(8, 32 // csize)
    tm = _round_up(min(tm, _round_up(M, sub)), sub)
    tn = _round_up(min(tn, _round_up(N, 128)), 128)
    tk = _round_up(min(tk, _round_up(K, 128)), 128)

    Mp, Np, Kp = _round_up(M, tm), _round_up(N, tn), _round_up(K, tk)
    nm, nn, nk = Mp // tm, Np // tn, Kp // tk

    use_scratch = (nk > 1) and (out_dtype != jnp.float32)
    per_b = (2 * (tm * tk + tk * tn) * csize
             + 2 * tm * tn * osize
             + (tm * tn * 4 if use_scratch else 0))
    bt, nb, pad_b = _pick_batch_tile(B, per_b, operand_budget, nm * nn)
    Bp = B + pad_b

    if (Mp, Kp) != (M, K) or pad_b:
        x1 = jnp.pad(x1, ((0, pad_b), (0, Mp - M), (0, Kp - K)))
    if (Kp, Np) != (K, N) or pad_b:
        x2 = jnp.pad(x2, ((0, pad_b), (0, Kp - K), (0, Np - N)))

    if nk == 1:
        kernel = _bmm_direct_kernel
        scratch_shapes = []
    elif use_scratch:
        kernel = _bmm_acc_scratch_kernel
        scratch_shapes = [pltpu.VMEM((bt, tm, tn), jnp.float32)]
    else:
        kernel = _bmm_acc_out_kernel          # accumulate into resident f32 out
        scratch_shapes = []

    flops = 2 * Bp * Mp * Np * Kp
    bytes_accessed = (
        nn * Bp * Mp * Kp * csize        # x1 streamed once per N tile
        + nm * Bp * Kp * Np * csize      # x2 streamed once per M tile
        + Bp * Mp * Np * osize
    )

    out = pl.pallas_call(
        kernel,
        out_shape=jax.ShapeDtypeStruct((Bp, Mp, Np), out_dtype),
        grid_spec=pltpu.PrefetchScalarGridSpec(
            num_scalar_prefetch=0,
            grid=(nb, nm, nn, nk),
            in_specs=[
                pl.BlockSpec((bt, tm, tk), lambda b, i, j, k: (b, i, k)),
                pl.BlockSpec((bt, tk, tn), lambda b, i, j, k: (b, k, j)),
            ],
            out_specs=pl.BlockSpec((bt, tm, tn), lambda b, i, j, k: (b, i, j)),
            scratch_shapes=scratch_shapes,
        ),
        compiler_params=pltpu.CompilerParams(
            dimension_semantics=("parallel", "parallel", "parallel", "arbitrary"),
            vmem_limit_bytes=vmem_limit,
        ),
        cost_estimate=pl.CostEstimate(
            flops=flops, transcendentals=0, bytes_accessed=bytes_accessed
        ),
    )(x1, x2)

    if (Bp, Mp, Np) != (B, M, N):
        out = out[:B, :M, :N]
    return out


if __name__ == "__main__":
    key = jax.random.PRNGKey(0)
    k1, k2, k3, k4 = jax.random.split(key, 4)

    # 1) Small attention-style bmm: B = batch*heads = 2, M = seq = 8,
    #    K = hidden = 32, N = seq = 8  -> small fast path, no padding.
    B, M, K, N = 2, 8, 32, 8
    x1 = jax.random.normal(k1, (B, M, K), dtype=jnp.float32)
    x2 = jax.random.normal(k2, (B, K, N), dtype=jnp.float32)
    ref = jnp.einsum("bmk,bkn->bmn", x1, x2)

    out = jax.block_until_ready(quant_matmul(x1, x2))            # bf16 MXU default
    assert out.shape == (B, M, N) and out.dtype == x1.dtype
    assert jnp.allclose(out, ref, atol=5e-2, rtol=5e-2)          # bf16 operand tolerance

    out_f32 = jax.block_until_ready(quant_matmul(x1, x2, compute_dtype=jnp.float32))
    assert jnp.allclose(out_f32, ref, atol=2e-2, rtol=2e-2)

    # 2) Exercise the tiled multi-K accumulation path (padding + reduction).
    B2, M2, K2, N2 = 2, 96, 320, 200
    y1 = jax.random.normal(k3, (B2, M2, K2), dtype=jnp.float32)
    y2 = jax.random.normal(k4, (B2, K2, N2), dtype=jnp.float32)
    ref2 = jnp.einsum("bmk,bkn->bmn", y1, y2)
    out2 = jax.block_until_ready(
        quant_matmul(y1, y2, compute_dtype=jnp.float32,
                     tm=128, tn=128, tk=128, force_tiled=True)
    )
    assert out2.shape == (B2, M2, N2)
    assert jnp.allclose(out2, ref2, atol=2e-2, rtol=2e-2)

    print("KERNEL_OK")
</pallas_src>

<mosaic_0001>
module attributes {stable_mosaic.version = 11 : i64} {
  func.func @_bmm_direct_kernel(%arg0: i32, %arg1: memref<1x8x32xbf16, #tpu.memory_space<vmem>>, %arg2: memref<1x32x8xbf16, #tpu.memory_space<vmem>>, %arg3: memref<1x8x8xf32, #tpu.memory_space<vmem>>) attributes {dimension_semantics = [#tpu.dimension_semantics<parallel>], iteration_bounds = array<i64: 2>, scalar_prefetch = 0 : i64, scratch_operands = 0 : i64, tpu.core_type = #tpu.core_type<tc>, window_params = [{transform_indices = @transform_0, window_bounds = array<i64: 1, 8, 32>}, {transform_indices = @transform_1, window_bounds = array<i64: 1, 32, 8>}, {transform_indices = @transform_2, window_bounds = array<i64: 1, 8, 8>}]} {
    %c0 = arith.constant 0 : index
    %c0_0 = arith.constant 0 : index
    %c0_1 = arith.constant 0 : index
    %0 = vector.load %arg1[%c0, %c0_0, %c0_1] : memref<1x8x32xbf16, #tpu.memory_space<vmem>>, vector<1x8x32xbf16>
    %c0_2 = arith.constant 0 : index
    %c0_3 = arith.constant 0 : index
    %c0_4 = arith.constant 0 : index
    %1 = vector.load %arg2[%c0_2, %c0_3, %c0_4] : memref<1x32x8xbf16, #tpu.memory_space<vmem>>, vector<1x32x8xbf16>
    "tpu.trace_start"() <{level = 10 : i32, message = "bmk,bkn->bmn"}> : () -> ()
    %cst = arith.constant dense<0.000000e+00> : vector<1x8x8xf32>
    %2 = tpu.matmul %0, %1, %cst {dimension_numbers = #tpu.dot_dimension_numbers<[2], [1], [1], [2], [0, 0, 0, 1, 1, 2], [0], [0]>} : vector<1x8x32xbf16>, vector<1x32x8xbf16>, vector<1x8x8xf32> -> vector<1x8x8xf32>
    "tpu.trace_stop"() : () -> ()
    %c0_5 = arith.constant 0 : index
    %c0_6 = arith.constant 0 : index
    %c0_7 = arith.constant 0 : index
    %3 = vector.load %arg3[%c0_5, %c0_6, %c0_7] : memref<1x8x8xf32, #tpu.memory_space<vmem>>, vector<1x8x8xf32>
    tpu.vector_store %arg3[%c0_5, %c0_6, %c0_7], %2 {strides = array<i32>} : memref<1x8x8xf32, #tpu.memory_space<vmem>>, vector<1x8x8xf32>,
    return
  }
  func.func @transform_0(%arg0: i32) -> (i32, i32, i32) {
    %c0_i32 = arith.constant 0 : i32
    %c0_i32_0 = arith.constant 0 : i32
    %c0_i32_1 = arith.constant 0 : i32
    return %arg0, %c0_i32, %c0_i32_0 : i32, i32, i32
  }
  func.func @transform_1(%arg0: i32) -> (i32, i32, i32) {
    %c0_i32 = arith.constant 0 : i32
    %c0_i32_0 = arith.constant 0 : i32
    %c0_i32_1 = arith.constant 0 : i32
    return %arg0, %c0_i32, %c0_i32_0 : i32, i32, i32
  }
  func.func @transform_2(%arg0: i32) -> (i32, i32, i32) {
    %c0_i32 = arith.constant 0 : i32
    %c0_i32_0 = arith.constant 0 : i32
    %c0_i32_1 = arith.constant 0 : i32
    return %arg0, %c0_i32, %c0_i32_0 : i32, i32, i32
  }
}

</mosaic_0001>

<llo_original>
// kernel: quant_matmul.1
$region0: #{quant_matmul.1}
  #allocation0 [shape = 'u32[]', space=smem, size = 0x4, offset = 0x4, fixed_abs, tag = 'smem constant byte address 0x4 - core index']
  #allocation1 [shape = 'u32[144,128]{1,0:T(1,128)}', space=vmem, size = 0x12000, scoped, tag = 'internal scratch']
  %s0 = inlined_call_operand.vmem [shape: bf16[2,8,32], index: 0, kind: input, shape index: {}]
  %s1 = inlined_call_operand.vmem [shape: bf16[2,32,8], index: 1, kind: input, shape index: {}]
  %s2 = inlined_call_operand.hbm [shape: f32[2,8,8], index: 2, kind: output, shape index: {}]
  %s3 = sld [smem:[#allocation0]]
  $region41: #{quant_matmul.1} parent=0
    _
  %s5 = ssub.s32 1, %s3
  %s6 = scalar_select 0, %s5, %s3
  $region1: #{quant_matmul.1} parent=0
    #allocation2 [shape = 'u8[8192]{0}', space=vmem, size = 0x2000, scoped, tag = 'output window, operand 0']
    #allocation3 [shape = 's32[2]{0}', space=sflag, size = 0x8, scoped, tag = 'scoped memory for quant_matmul.1']
    %7 = vsyncpa [#allocation3], 0
    %s8 = scalar_lea.sflag [#allocation3], 1
    %9 = vsyncpa %s8, 0
    loop: start=0, step=1, limit=4
    $region2: #{quant_matmul.1} parent=1 // loop_pre_header
      _
    $region3: #{quant_matmul.1} parent=1 // loop_header
      %s11 = sphi 0, %s15
      %p12 = scmp.ge.s32.totalorder %s11, 4
      %s21 = sphi 0, %s23
      %s24 = sphi 0, %s21
      %s25 = sphi 0, %s24
      %s41 = sphi 0, %s25
      %s47 = sphi 0, %s49
      %s50 = sphi 0, %s47
      %s51 = sphi 0, %s50
      %s67 = sphi 0, %s51
      %s73 = sphi 0, %s75
      %s76 = sphi 0, %s73
      %s77 = sphi 0, %s76
      %s93 = sphi 0, %s77
    $region4: #{quant_matmul.1} parent=1 // loop_header_branch
      %14 = sbr.rel (%p12) target = $region8
    $region5: #{quant_matmul.1} parent=1 // loop_body
      %s16 = ssub.s32 %s11, 1
      %s17 = ssub.s32 %s11, 2
      %s18 = sadd.s32 %s11, 1
      %s19 = ssub.s32 %s11, %s18
      %p20 = scmp.eq.s32.totalorder %s19, 0
      %s22 = sadd.s32 %s21, 1
      %s23 = scalar_select %p20, %s21, %s22
      %p26 = pneg %p20
      %p27 = scmp.eq.s32.totalorder %s11, 1
      %p28 = por %p26, %p27
      %p29 = scmp.ne.s32.totalorder %s21, %s24
      %p30 = scmp.eq.s32.totalorder %s11, 0
      %p31 = por %p29, %p30
      %p32 = scmp.ne.s32.totalorder %s21, %s24
      %p33 = scmp.eq.s32.totalorder %s16, 1
      %p34 = por %p32, %p33
      %p35 = scmp.ne.s32.totalorder %s24, %s25
      %p36 = scmp.eq.s32.totalorder %s16, 0
      %p37 = por %p35, %p36
      %p38 = scmp.ne.s32.totalorder %s24, %s25
      %p39 = scmp.eq.s32.totalorder %s17, 1
      %p40 = por %p38, %p39
      %p42 = scmp.ne.s32.totalorder %s25, %s41
      %p43 = scmp.eq.s32.totalorder %s17, 0
      %p44 = por %p42, %p43
      %s45 = ssub.s32 %s11, %s18
      %p46 = scmp.eq.s32.totalorder %s45, 0
      %s48 = sadd.s32 %s47, 1
      %s49 = scalar_select %p46, %s47, %s48
      %p52 = pneg %p46
      %p53 = scmp.eq.s32.totalorder %s11, 1
      %p54 = por %p52, %p53
      %p55 = scmp.ne.s32.totalorder %s47, %s50
      %p56 = scmp.eq.s32.totalorder %s11, 0
      %p57 = por %p55, %p56
      %p58 = scmp.ne.s32.totalorder %s47, %s50
      %p59 = scmp.eq.s32.totalorder %s16, 1
      %p60 = por %p58, %p59
      %p61 = scmp.ne.s32.totalorder %s50, %s51
      %p62 = scmp.eq.s32.totalorder %s16, 0
      %p63 = por %p61, %p62
      %p64 = scmp.ne.s32.totalorder %s50, %s51
      %p65 = scmp.eq.s32.totalorder %s17, 1
      %p66 = por %p64, %p65
      %p68 = scmp.ne.s32.totalorder %s51, %s67
      %p69 = scmp.eq.s32.totalorder %s17, 0
      %p70 = por %p68, %p69
      %s71 = ssub.s32 %s11, %s18
      %p72 = scmp.eq.s32.totalorder %s71, 0
      %s74 = sadd.s32 %s73, 1
      %s75 = scalar_select %p72, %s73, %s74
      %p78 = pneg %p72
      %p79 = scmp.eq.s32.totalorder %s11, 1
      %p80 = por %p78, %p79
      %p81 = scmp.ne.s32.totalorder %s73, %s76
      %p82 = scmp.eq.s32.totalorder %s11, 0
      %p83 = por %p81, %p82
      %p84 = scmp.ne.s32.totalorder %s73, %s76
      %p85 = scmp.eq.s32.totalorder %s16, 1
      %p86 = por %p84, %p85
      %p87 = scmp.ne.s32.totalorder %s76, %s77
      %p88 = scmp.eq.s32.totalorder %s16, 0
      %p89 = por %p87, %p88
      %p90 = scmp.ne.s32.totalorder %s76, %s77
      %p91 = scmp.eq.s32.totalorder %s17, 1
      %p92 = por %p90, %p91
      %p94 = scmp.ne.s32.totalorder %s77, %s93
      %p95 = scmp.eq.s32.totalorder %s17, 0
      %p96 = por %p94, %p95
      %p97 = scmp.le.s32.totalorder 1, %s11
      %p98 = scmp.lt.s32.totalorder %s11, 3
      %p99 = pnand %p97, %p98
      %p100 = pneg %p99
      // Predicated region
      $region9: #{quant_matmul.1} parent=5 // pred_check
        _
      $region10: #{quant_matmul.1} parent=5 // pred_check_branch
        %102 = sbr.rel (%p99) target = $region12
      $region11: #{quant_matmul.1} parent=5 // pred_region
        %s103 = ssub.s32 %s11, 1
      $region12: #{quant_matmul.1} parent=5 // pred_fallthru
        _
      %p104 = scmp.lt.s32.totalorder %s11, 2
      // Predicated region
      $region13: #{quant_matmul.1} parent=5 // pred_check
        %p105 = pneg %p104
      $region14: #{quant_matmul.1} parent=5 // pred_check_branch
        %107 = sbr.rel (%p105) target = $region16
      $region15: #{quant_matmul.1} parent=5 // pred_region
        // Predicated region
        $region17: #{quant_matmul.1} parent=15 // pred_check
          %p108 = pneg %p31
        $region18: #{quant_matmul.1} parent=15 // pred_check_branch
          %110 = sbr.rel (%p108) target = $region20
        $region19: #{quant_matmul.1} parent=15 // pred_region
          %p111 = scmp.lt.s32.totalorder %s11, 1
          %s112 = scalar_select %p111, %s11, 1
          %s113 = smul.addr %s112, 4
          %s114 = scalar_lea.vmem %s0, %s113
        $region20: #{quant_matmul.1} parent=15 // pred_fallthru
          _
        // Predicated region
        $region21: #{quant_matmul.1} parent=15 // pred_check
          %p115 = pneg %p57
        $region22: #{quant_matmul.1} parent=15 // pred_check_branch
          %117 = sbr.rel (%p115) target = $region24
        $region23: #{quant_matmul.1} parent=15 // pred_region
          %p118 = scmp.lt.s32.totalorder %s11, 1
          %s119 = scalar_select %p118, %s11, 1
          %s120 = smul.addr %s119, 4
          %s121 = smul.addr %s120, 4
          %s122 = scalar_lea.vmem %s1, %s121
        $region24: #{quant_matmul.1} parent=15 // pred_fallthru
          _
      $region16: #{quant_matmul.1} parent=5 // pred_fallthru
        _
      %p123 = scmp.le.s32.totalorder 1, %s11
      %p124 = scmp.lt.s32.totalorder %s11, 3
      %p125 = pnand %p123, %p124
      %p126 = pneg %p125
      // Predicated region
      $region25: #{quant_matmul.1} parent=5 // pred_check
        _
      $region26: #{quant_matmul.1} parent=5 // pred_check_branch
        %128 = sbr.rel (%p125) target = $region28
      $region27: #{quant_matmul.1} parent=5 // pred_region
        %s129 = ssub.s32 %s11, 1
        %p130 = scmp.lt.s32.totalorder %s16, 1
        %s131 = scalar_select %p130, %s16, 1
        %s132 = smul.addr %s131, 4
        %s133 = scalar_lea.vmem %s0, %s132
        %p134 = pneg %p37
        %p135 = pneg %p34
        %p136 = scmp.lt.s32.totalorder %s16, 1
        %s137 = scalar_select %p136, %s16, 1
        %s138 = smul.addr %s137, 4
        %s139 = smul.addr %s138, 4
        %s140 = scalar_lea.vmem %s1, %s139
        %p141 = pneg %p63
        %p142 = pneg %p60
        %p143 = pneg %p89
        %p144 = pneg %p86
        %s145 = sand.u32 %s76, 1
        %s146 = scalar_lea.sflag [#allocation3], %s145
        %s147 = sand.u32 %s76, 1
        %s148 = smul.addr %s147, 8
        %s149 = scalar_lea.vmem [#allocation2], %s148
        %p150 = scmp.lt.s32.totalorder %s16, 1
        %s151 = scalar_select %p150, %s16, 1
        %s152 = smul.addr %s151, 4
        %s153 = scalar_lea.vmem %s0, %s152
        %p154 = scmp.lt.s32.totalorder %s16, 1
        %s155 = scalar_select %p154, %s16, 1
        %s156 = smul.addr %s155, 4
        %s157 = smul.addr %s156, 4
        %s158 = scalar_lea.vmem %s1, %s157
        %v160 = vld [vmem:[%s153] sm:$0xf]
        %v161 = vld [vmem:[%s158] sm:$0xf]
        %v162 = vld [vmem:[%s158 + $0x4] sm:$0xf]
        %v163 = vld [vmem:[%s158 + $0x8] sm:$0xf]
        %v164 = vld [vmem:[%s158 + $0xc] sm:$0xf]
        %v169 = vunpack.c.l.b16 %v161
        %v170 = vunpack.c.l.b16 %v162
        %v171 = vunpack.c.l.b16 %v163
        %v172 = vunpack.c.l.b16 %v164
        %v173 = vpack.c.b16 %v170, %v169
        %v174 = vpack.c.b16 %v172, %v171
        %vm177 = vcmask 261120
        %v179 = vsel %vm177, %v160, 0
        %181 = vmatprep.subr.bf16.mxu0 0
        %182 = vmatpush1.bf16.msra.mxu0 0
        %183 = vmatprep.subr.bf16.mxu0 0
        %184 = vmatpush1.bf16.msra.mxu0 0
        %185 = vmatprep.subr.bf16.mxu0 0
        %186 = vmatpush1.bf16.msra.mxu0 0
        %187 = vmatprep.subr.bf16.mxu0 0
        %188 = vmatpush1.bf16.msra.mxu0 0
        %189 = vmatprep.subr.bf16.mxu0 0
        %190 = vmatpush1.bf16.msra.mxu0 0
        %191 = vmatprep.subr.bf16.mxu0 0
        %192 = vmatpush1.bf16.msra.mxu0 0
        %193 = vmatprep.subr.bf16.mxu0 0
        %194 = vmatpush1.bf16.msra.mxu0 %v174
        %195 = vmatprep.subr.bf16.mxu0 0
        %196 = vmatpush1.bf16.msra.mxu0 %v173
        %197 = vmatprep.subr.bf16.mxu0 0
        %198 = vmatpush2.bf16.msra.mxu0 0
        %199 = vmatprep.subr.bf16.mxu0 0
        %200 = vmatpush2.bf16.msra.mxu0 0
        %201 = vmatprep.subr.bf16.mxu0 0
        %202 = vmatpush2.bf16.msra.mxu0 0
        %203 = vmatprep.subr.bf16.mxu0 0
        %204 = vmatpush2.bf16.msra.mxu0 0
        %205 = vmatprep.subr.bf16.mxu0 0
        %206 = vmatpush2.bf16.msra.mxu0 0
        %207 = vmatprep.subr.bf16.mxu0 0
        %208 = vmatpush2.bf16.msra.mxu0 0
        %209 = vmatprep.subr.bf16.mxu0 0
        %210 = vmatpush2.bf16.msra.mxu0 0
        %211 = vmatprep.subr.bf16.mxu0 0
        %212 = vmatpush2.bf16.msra.mxu0 0
        %213 = vmatprep.mubr.bf16.mxu0 0
        %214 = vmatmul.mubr.bf16.gmra.mxu0 %v179
        %v215 = vpop.f32.mrf.mxu0
        %v216 = vadd.f32 0.0, %v215
        %v217 = vpop.f32.mrf.mxu0
        %v218 = vpop.f32.mrf.mxu0
        %v219 = vpop.f32.mrf.mxu0
        %220 = vdwg.mxu0
        %vm221 = vcmask 64512
        %222 = vst.msk [vmem:[%s149] sm:$0xff] %vm221, %v216
        %s223 = sand.u32 %s76, 1
        %s224 = scalar_lea.sflag [#allocation3], %s223
        %s225 = sand.u32 %s76, 1
        %s226 = smul.addr %s225, 8
        %s227 = scalar_lea.vmem [#allocation2], %s226
        // Predicated region
        $region29: #{quant_matmul.1} parent=27 // pred_check
          %p228 = pneg %p86
        $region30: #{quant_matmul.1} parent=27 // pred_check_branch
          %230 = sbr.rel (%p228) target = $region32
        $region31: #{quant_matmul.1} parent=27 // pred_region
          %s232 = ssub.s32 128, 128
          %233 = vsyncadd %s224, %s232
          %s234 = smul.addr %s16, 128
          %s235 = scalar_lea.hbm %s2, %s234
          %s237 = sshll.u32 %s227, 4
          %s238 = int_to_ptr.vmem [resolvable:$true] %s237
          %240 = dma.vmem_to_hbm [thread:$0]  %s238, 128, %s235, %s224
        $region32: #{quant_matmul.1} parent=27 // pred_fallthru
          _
      $region28: #{quant_matmul.1} parent=5 // pred_fallthru
        _
      %p241 = scmp.le.s32.totalorder 2, %s11
      // Predicated region
      $region33: #{quant_matmul.1} parent=5 // pred_check
        %p242 = pneg %p241
      $region34: #{quant_matmul.1} parent=5 // pred_check_branch
        %244 = sbr.rel (%p242) target = $region36
      $region35: #{quant_matmul.1} parent=5 // pred_region
        %s245 = ssub.s32 %s11, 2
        // Predicated region
        $region37: #{quant_matmul.1} parent=35 // pred_check
          %p246 = pneg %p92
        $region38: #{quant_matmul.1} parent=35 // pred_check_branch
          %248 = sbr.rel (%p246) target = $region40
        $region39: #{quant_matmul.1} parent=35 // pred_region
          %s249 = sand.u32 %s77, 1
          %s250 = scalar_lea.sflag [#allocation3], %s249
          %s251 = sand.u32 %s77, 1
          %s252 = smul.addr %s251, 8
          %s253 = scalar_lea.vmem [#allocation2], %s252
          %254 = dma.done %s250, 128
        $region40: #{quant_matmul.1} parent=35 // pred_fallthru
          _
      $region36: #{quant_matmul.1} parent=5 // pred_fallthru
        _
    $region6: #{quant_matmul.1} parent=1 // loop_footer
      %s15 = sadd.s32 1, %s11
    $region7: #{quant_matmul.1} parent=1 // loop_footer_branch
      %10 = sbr.rel target = $region3
    $region8: #{quant_matmul.1} parent=1 // loop_exit
      _
    %255 = vsyncpa [#allocation3], 1
    %s256 = scalar_lea.sflag [#allocation3], 1
    %257 = vsyncpa %s256, 1

</llo_original>
